<compile_context>
chip_gen: v7x
topology: tpu7x:2x2x1
jax: 0.10.0
libtpu: 0.0.40
codegen_flags: <defaults>
</compile_context>

<pallas_src>
import functools
import math

import jax
import jax.numpy as jnp
from jax import lax
from jax.experimental import pallas as pl
from jax.experimental.pallas import tpu as pltpu


def _round_up(x, m):
    return ((x + m - 1) // m) * m


def _pad2(a, rows, cols):
    """Zero-pad a 2-D array to (rows, cols)."""
    out = jnp.zeros((rows, cols), a.dtype)
    return out.at[: a.shape[0], : a.shape[1]].set(a)


def _vmem_limit():
    """Per-chip VMEM budget with ~25% headroom (v7x 64MiB -> 48, v5e/v6e 128 -> 96)."""
    default = 48 * 1024 * 1024
    try:
        cap = getattr(pltpu.get_tpu_info(), "vmem_capacity_bytes", None)
        if cap:
            return int(min(cap * 3 // 4, 100 * 1024 * 1024))
    except Exception:
        pass
    return default


def _pick_tile(n_pad, max_tile, prefer_split=True):
    """Pick a tile size dividing n_pad; prefer >=2 grid steps (v7x megacore)."""
    cands = [t for t in (1024, 512, 256, 128) if t <= max_tile]
    if prefer_split:
        for t in cands:
            if n_pad % t == 0 and n_pad // t >= 2:
                return t
    for t in cands:
        if n_pad % t == 0:
            return t
    return n_pad


# --------------------------------------------------------------------------
# Fused projection kernel: proj = x @ [Wq/sqrt(C) | Wskip | Wk | Wv]  (bf16)
# --------------------------------------------------------------------------
def _proj_kernel(x_ref, w_ref, o_ref):
    o_ref[...] = jnp.dot(
        x_ref[...], w_ref[...], preferred_element_type=jnp.float32
    ).astype(o_ref.dtype)


def fused_projection(x_pad, w_all, *, vmem_limit):
    n_pad, din_pad = x_pad.shape
    dcols = w_all.shape[1]
    tile = _pick_tile(n_pad, 256)
    return pl.pallas_call(
        _proj_kernel,
        out_shape=jax.ShapeDtypeStruct((n_pad, dcols), jnp.bfloat16),
        grid=(n_pad // tile,),
        in_specs=[
            pl.BlockSpec((tile, din_pad), lambda i: (i, 0)),
            pl.BlockSpec((din_pad, dcols), lambda i: (0, 0)),
        ],
        out_specs=pl.BlockSpec((tile, dcols), lambda i: (i, 0)),
        compiler_params=pltpu.CompilerParams(
            dimension_semantics=("parallel",),
            vmem_limit_bytes=vmem_limit,
        ),
    )(x_pad, w_all)


# --------------------------------------------------------------------------
# Masked dense attention with online softmax over source blocks.
# --------------------------------------------------------------------------
def _attn_kernel(qs_ref, kv_ref, adj_ref, o_ref, m_sc, l_sc, acc_sc,
                 *, c_pad, apply_relu):
    s = pl.program_id(1)

    @pl.when(s == 0)
    def _():
        m_sc[...] = jnp.full_like(m_sc, -1e30)
        l_sc[...] = jnp.zeros_like(l_sc)
        acc_sc[...] = jnp.zeros_like(acc_sc)

    q = qs_ref[:, :c_pad]          # bf16, 1/sqrt(C) already folded into Wq
    k = kv_ref[:, :c_pad]          # bf16
    v = kv_ref[:, c_pad:]          # bf16

    # scores[i, j] = q_i . k_j  (contract last dims; no k.T relayout)
    scores = lax.dot_general(
        q, k, dimension_numbers=(((1,), (1,)), ((), ())),
        preferred_element_type=jnp.float32)                 # [TI, TS] f32

    # Single additive masking pass (f32 so -1e30 stays finite); p is multiplied
    # by adj so masked entries are exactly 0 and isolated rows keep l == 0.
    adj_f = adj_ref[...].astype(jnp.float32)                # 0/1
    masked = scores + (adj_f - 1.0) * jnp.float32(1e30)

    m_new = jnp.maximum(m_sc[...], jnp.max(masked, axis=-1, keepdims=True))
    alpha = jnp.exp(m_sc[...] - m_new)
    p = jnp.exp(masked - m_new) * adj_f

    l_sc[...] = alpha * l_sc[...] + jnp.sum(p, axis=-1, keepdims=True)
    acc_sc[...] = alpha * acc_sc[...] + jnp.dot(
        p.astype(jnp.bfloat16), v, preferred_element_type=jnp.float32)
    m_sc[...] = m_new

    @pl.when(s == pl.num_programs(1) - 1)
    def _():
        skip = qs_ref[:, c_pad:].astype(jnp.float32)
        denom = l_sc[...]
        inv = pl.reciprocal(jnp.where(denom > 0.0, denom, 1.0), approx=True)
        out = acc_sc[...] * inv + skip
        if apply_relu:
            out = jnp.maximum(out, 0.0)
        o_ref[...] = out.astype(o_ref.dtype)


def transformer_conv(x_pad, wq, wk, wv, ws, adj, *, apply_relu, last):
    """One TransformerConv layer on padded inputs.

    x_pad: [N_pad, Din_pad] bf16 (zero-padded).  wq/wk/wv/ws: [d_in, d_out] f32.
    adj:   [N_pad, N_pad] int8 mask, adj[dst, src] = 1.
    Returns [N_pad, C_pad] (f32 for the last layer, bf16 otherwise).
    """
    n_pad, din_pad = x_pad.shape
    d_in, d_out = wq.shape
    c_pad = _round_up(d_out, 128)

    # Fold 1/sqrt(C) into Wq; fuse all four projections into one lane-dense weight.
    scale = 1.0 / math.sqrt(d_out)
    w_all = jnp.concatenate(
        [_pad2(wq * scale, din_pad, c_pad),
         _pad2(ws, din_pad, c_pad),
         _pad2(wk, din_pad, c_pad),
         _pad2(wv, din_pad, c_pad)], axis=1).astype(jnp.bfloat16)  # [Din_pad, 4*C]

    vmem_limit = _vmem_limit()

    # Hoisted projection: computed once per layer, not once per destination tile.
    proj = fused_projection(x_pad, w_all, vmem_limit=vmem_limit)   # [N_pad, 4*C] bf16

    tile_i = _pick_tile(n_pad, 256)                 # dst rows per step ("parallel")
    src_blk = _pick_tile(n_pad, 1024, prefer_split=False)  # src cols per step ("arbitrary")
    grid = (n_pad // tile_i, n_pad // src_blk)

    kernel = functools.partial(_attn_kernel, c_pad=c_pad, apply_relu=apply_relu)
    out_dtype = jnp.float32 if last else jnp.bfloat16

    return pl.pallas_call(
        kernel,
        out_shape=jax.ShapeDtypeStruct((n_pad, c_pad), out_dtype),
        grid=grid,
        in_specs=[
            # q | skip columns of proj, tiled by destination rows (resident over src).
            pl.BlockSpec((tile_i, 2 * c_pad), lambda i, s: (i, 0)),
            # k | v columns of proj, tiled by source blocks (column-block index 1).
            pl.BlockSpec((src_blk, 2 * c_pad), lambda i, s: (s, 1)),
            # int8 adjacency tile [dst rows, src cols].
            pl.BlockSpec((tile_i, src_blk), lambda i, s: (i, s)),
        ],
        out_specs=pl.BlockSpec((tile_i, c_pad), lambda i, s: (i, 0)),
        scratch_shapes=[
            pltpu.VMEM((tile_i, 1), jnp.float32),      # running max m
            pltpu.VMEM((tile_i, 1), jnp.float32),      # running denom l
            pltpu.VMEM((tile_i, c_pad), jnp.float32),  # running numerator acc
        ],
        compiler_params=pltpu.CompilerParams(
            dimension_semantics=("parallel", "arbitrary"),
            vmem_limit_bytes=vmem_limit,
        ),
    )(proj, proj, adj)


# --------------------------------------------------------------------------
# Parameters / wrapper
# --------------------------------------------------------------------------
def xavier_uniform(key, fan_in, fan_out):
    # torch.nn.init.xavier_uniform_ on a [out, in] weight; stored transposed
    # as [in, out] so the kernel computes x @ W.
    bound = math.sqrt(6.0 / (fan_in + fan_out))
    return jax.random.uniform(key, (fan_in, fan_out), jnp.float32, -bound, bound)


def make_layer_params(key, d_in, d_out):
    kq, kk, kv, ks = jax.random.split(key, 4)
    return {
        "wq": xavier_uniform(kq, d_in, d_out),
        "wk": xavier_uniform(kk, d_in, d_out),
        "wv": xavier_uniform(kv, d_in, d_out),
        "ws": xavier_uniform(ks, d_in, d_out),
    }
    # biases of lin_query/lin_key/lin_value/lin_skip are zero-initialized by
    # GNN._init_weights, so they are omitted.


def gnn_forward(x, edge_index, params):
    """GNN.forward: ReLU (fused into the kernel) between layers, none after last."""
    n, d_in = x.shape
    n_pad = _round_up(n, 128)
    din_pad = _round_up(d_in, 128)

    x_pad = _pad2(x, n_pad, din_pad).astype(jnp.bfloat16)

    # int8 adjacency mask adj[dst, src] = 1 ("source_to_target" flow).
    # NOTE: duplicate edges collapse to a single 1 (multigraphs diverge from PyG).
    adj = jnp.zeros((n_pad, n_pad), jnp.int8)
    adj = adj.at[edge_index[1], edge_index[0]].set(jnp.int8(1))

    h = x_pad
    for li, layer in enumerate(params):
        last = li == len(params) - 1
        h = transformer_conv(h, layer["wq"], layer["wk"], layer["wv"], layer["ws"],
                             adj, apply_relu=not last, last=last)
        # non-last layers already emit bf16 from the kernel (no extra cast pass)

    d_out = params[-1]["wq"].shape[1]
    return h[:n, :d_out]


if __name__ == "__main__":
    num_nodes = 16
    input_dim = 8
    out_dim = 4
    hidden_dim = 2 * out_dim          # gnn_layer_num=2 -> [input_dim -> 2*out_dim -> out_dim]
    num_edges = 32

    root = jax.random.PRNGKey(0)
    kx, ke, k1, k2 = jax.random.split(root, 4)

    # node features [num_nodes, input_dim]
    x = jax.random.normal(kx, (num_nodes, input_dim), jnp.float32)

    # edge connectivity [2, num_edges] (row0 = source, row1 = target)
    edge_index = jax.random.randint(ke, (2, num_edges), 0, num_nodes, jnp.int32)

    # deterministic xavier-uniform params for the two TransformerConv layers
    params = [
        make_layer_params(k1, input_dim, hidden_dim),
        make_layer_params(k2, hidden_dim, out_dim),
    ]

    # activation is a constructor argument of GNN; ReLU is fused into the kernel here.
    node_emb = gnn_forward(x, edge_index, params)
    node_emb = jax.block_until_ready(node_emb)

    assert node_emb.shape == (num_nodes, out_dim)
    print("KERNEL_OK")
</pallas_src>

<mosaic_0001>
module attributes {stable_mosaic.version = 11 : i64} {
  func.func @_proj_kernel(%arg0: i32, %arg1: memref<128x128xbf16, #tpu.memory_space<vmem>>, %arg2: memref<128x512xbf16, #tpu.memory_space<vmem>>, %arg3: memref<128x512xbf16, #tpu.memory_space<vmem>>) attributes {dimension_semantics = [#tpu.dimension_semantics<parallel>], iteration_bounds = array<i64: 1>, scalar_prefetch = 0 : i64, scratch_operands = 0 : i64, tpu.core_type = #tpu.core_type<tc>, window_params = [{transform_indices = @transform_0, window_bounds = array<i64: 128, 128>}, {pipeline_mode = #tpu.pipeline_mode<synchronous>, transform_indices = @transform_1, window_bounds = array<i64: 128, 512>}, {transform_indices = @transform_2, window_bounds = array<i64: 128, 512>}]} {
    %c0 = arith.constant 0 : index
    %c0_0 = arith.constant 0 : index
    %0 = vector.load %arg1[%c0, %c0_0] : memref<128x128xbf16, #tpu.memory_space<vmem>>, vector<128x128xbf16>
    %c0_1 = arith.constant 0 : index
    %c0_2 = arith.constant 0 : index
    %1 = vector.load %arg2[%c0_1, %c0_2] : memref<128x512xbf16, #tpu.memory_space<vmem>>, vector<128x512xbf16>
    %cst = arith.constant dense<0.000000e+00> : vector<128x512xf32>
    %2 = tpu.matmul %0, %1, %cst {dimension_numbers = #tpu.dot_dimension_numbers<[1], [0], [0], [1], [0, 0, 1, 1], [], []>} : vector<128x128xbf16>, vector<128x512xbf16>, vector<128x512xf32> -> vector<128x512xf32>
    %3 = arith.truncf %2 : vector<128x512xf32> to vector<128x512xbf16>
    %c0_3 = arith.constant 0 : index
    %c0_4 = arith.constant 0 : index
    %4 = vector.load %arg3[%c0_3, %c0_4] : memref<128x512xbf16, #tpu.memory_space<vmem>>, vector<128x512xbf16>
    tpu.vector_store %arg3[%c0_3, %c0_4], %3 {strides = array<i32>} : memref<128x512xbf16, #tpu.memory_space<vmem>>, vector<128x512xbf16>,
    return
  }
  func.func @transform_0(%arg0: i32) -> (i32, i32) {
    %c0_i32 = arith.constant 0 : i32
    %c0_i32_0 = arith.constant 0 : i32
    return %arg0, %c0_i32 : i32, i32
  }
  func.func @transform_1(%arg0: i32) -> (i32, i32) {
    %c0_i32 = arith.constant 0 : i32
    %c0_i32_0 = arith.constant 0 : i32
    %c0_i32_1 = arith.constant 0 : i32
    return %c0_i32, %c0_i32_0 : i32, i32
  }
  func.func @transform_2(%arg0: i32) -> (i32, i32) {
    %c0_i32 = arith.constant 0 : i32
    %c0_i32_0 = arith.constant 0 : i32
    return %arg0, %c0_i32 : i32, i32
  }
}

</mosaic_0001>

<llo_original>
// kernel: tpu_custom_call.1
$region0: #{tpu_custom_call.1}
  #allocation0 [shape = 'u32[]', space=smem, size = 0x4, offset = 0x4, fixed_abs, tag = 'smem constant byte address 0x4 - core index']
  #allocation1 [shape = 'u32[144,128]{1,0:T(1,128)}', space=vmem, size = 0x12000, scoped, tag = 'internal scratch']
  %s0 = inlined_call_operand.hbm [shape: bf16[128,128], index: 0, kind: input, shape index: {}]
  %s1 = inlined_call_operand.hbm [shape: bf16[128,512], index: 1, kind: input, shape index: {}]
  %s2 = inlined_call_operand.hbm [shape: bf16[128,512], index: 2, kind: output, shape index: {}]
  %s3 = sld [smem:[#allocation0]]
  $region26: #{tpu_custom_call.1} parent=0
    _
  %s5 = ssub.s32 1, %s3
  %s6 = scalar_select 0, %s5, %s3
  $region1: #{tpu_custom_call.1} parent=0
    #allocation2 [shape = 'u8[32768]{0}', space=vmem, size = 0x8000, scoped, tag = 'input window, operand 0, single buffered']
    #allocation3 [shape = 's32[1]{0}', space=sflag, size = 0x4, scoped, tag = 'scoped memory for tpu_custom_call.1']
    #allocation4 [shape = 's32[1]{0}', space=sflag, size = 0x4, scoped, tag = 'scoped memory for tpu_custom_call.1']
    #allocation5 [shape = 'u8[131072]{0}', space=vmem, size = 0x20000, scoped, tag = 'input window, operand 1, single buffered']
    #allocation6 [shape = 's32[1]{0}', space=sflag, size = 0x4, scoped, tag = 'scoped memory for tpu_custom_call.1']
    #allocation7 [shape = 'u8[131072]{0}', space=vmem, size = 0x20000, scoped, tag = 'output window, operand 0, single buffered']
    %7 = vsyncpa [#allocation3], 0
    %8 = vsyncpa [#allocation6], 0
    %9 = vsyncpa [#allocation4], 0
    // Predicated region
    $region2: #{tpu_custom_call.1} parent=1 // pred_check
      _
    $region3: #{tpu_custom_call.1} parent=1 // pred_check_branch
      %11 = sbr.rel (0) target = $region5
    $region4: #{tpu_custom_call.1} parent=1 // pred_region
      %s13 = ssub.s32 1024, 1024
      %14 = vsyncadd [#allocation3], %s13
      %s15 = sshll.u32 [#allocation2], 4
      %s16 = int_to_ptr.vmem [resolvable:$true] %s15
      %21 = dma.hbm_to_vmem [thread:$0]  %s0, 1024, %s16, [#allocation3], 64, 64, 4
    $region5: #{tpu_custom_call.1} parent=1 // pred_fallthru
      _
    // Predicated region
    $region6: #{tpu_custom_call.1} parent=1 // pred_check
      _
    $region7: #{tpu_custom_call.1} parent=1 // pred_check_branch
      %23 = sbr.rel (0) target = $region9
    $region8: #{tpu_custom_call.1} parent=1 // pred_region
      %s25 = ssub.s32 4096, 4096
      %26 = vsyncadd [#allocation6], %s25
      %s27 = sshll.u32 [#allocation5], 4
      %s28 = int_to_ptr.vmem [resolvable:$true] %s27
      %33 = dma.hbm_to_vmem [thread:$0]  %s1, 4096, %s28, [#allocation6], 256, 256, 16
    $region9: #{tpu_custom_call.1} parent=1 // pred_fallthru
      _
    // Predicated region
    $region10: #{tpu_custom_call.1} parent=1 // pred_check
      _
    $region11: #{tpu_custom_call.1} parent=1 // pred_check_branch
      %35 = sbr.rel (0) target = $region13
    $region12: #{tpu_custom_call.1} parent=1 // pred_region
      %36 = dma.done [#allocation3], 1024
    $region13: #{tpu_custom_call.1} parent=1 // pred_fallthru
      _
    // Predicated region
    $region14: #{tpu_custom_call.1} parent=1 // pred_check
      _
    $region15: #{tpu_custom_call.1} parent=1 // pred_check_branch
      %38 = sbr.rel (0) target = $region17
    $region16: #{tpu_custom_call.1} parent=1 // pred_region
      %39 = dma.done [#allocation6], 4096
    $region17: #{tpu_custom_call.1} parent=1 // pred_fallthru
      _
    %v41 = vld [vmem:[#allocation2] sm:$0xf]
    %v42 = vld [vmem:[#allocation2 + $0x4] sm:$0xf]
    %v43 = vld [vmem:[#allocation2 + $0x8] sm:$0xf]
    %v44 = vld [vmem:[#allocation2 + $0xc] sm:$0xf]
    %v45 = vld [vmem:[#allocation2 + $0x10] sm:$0xf]
    %v46 = vld [vmem:[#allocation2 + $0x14] sm:$0xf]
    %v47 = vld [vmem:[#allocation2 + $0x18] sm:$0xf]
    %v48 = vld [vmem:[#allocation2 + $0x1c] sm:$0xf]
    %v49 = vld [vmem:[#allocation2 + $0x20] sm:$0xf]
    %v50 = vld [vmem:[#allocation2 + $0x24] sm:$0xf]
    %v51 = vld [vmem:[#allocation2 + $0x28] sm:$0xf]
    %v52 = vld [vmem:[#allocation2 + $0x2c] sm:$0xf]
    %v53 = vld [vmem:[#allocation2 + $0x30] sm:$0xf]
    %v54 = vld [vmem:[#allocation2 + $0x34] sm:$0xf]
    %v55 = vld [vmem:[#allocation2 + $0x38] sm:$0xf]
    %v56 = vld [vmem:[#allocation2 + $0x3c] sm:$0xf]
    %v57 = vld [vmem:[#allocation5] sm:$0xff]
    %v58 = vld [vmem:[#allocation5 + $0x8] sm:$0xff]
    %v59 = vld [vmem:[#allocation5 + $0x10] sm:$0xff]
    %v60 = vld [vmem:[#allocation5 + $0x18] sm:$0xff]
    %v61 = vld [vmem:[#allocation5 + $0x20] sm:$0xff]
    %v62 = vld [vmem:[#allocation5 + $0x28] sm:$0xff]
    %v63 = vld [vmem:[#allocation5 + $0x30] sm:$0xff]
    %v64 = vld [vmem:[#allocation5 + $0x38] sm:$0xff]
    %v65 = vld [vmem:[#allocation5 + $0x40] sm:$0xff]
    %v66 = vld [vmem:[#allocation5 + $0x48] sm:$0xff]
    %v67 = vld [vmem:[#allocation5 + $0x50] sm:$0xff]
    %v68 = vld [vmem:[#allocation5 + $0x58] sm:$0xff]
    %v69 = vld [vmem:[#allocation5 + $0x60] sm:$0xff]
    %v70 = vld [vmem:[#allocation5 + $0x68] sm:$0xff]
    %v71 = vld [vmem:[#allocation5 + $0x70] sm:$0xff]
    %v72 = vld [vmem:[#allocation5 + $0x78] sm:$0xff]
    %v73 = vld [vmem:[#allocation5 + $0x80] sm:$0xff]
    %v74 = vld [vmem:[#allocation5 + $0x88] sm:$0xff]
    %v75 = vld [vmem:[#allocation5 + $0x90] sm:$0xff]
    %v76 = vld [vmem:[#allocation5 + $0x98] sm:$0xff]
    %v77 = vld [vmem:[#allocation5 + $0xa0] sm:$0xff]
    %v78 = vld [vmem:[#allocation5 + $0xa8] sm:$0xff]
    %v79 = vld [vmem:[#allocation5 + $0xb0] sm:$0xff]
    %v80 = vld [vmem:[#allocation5 + $0xb8] sm:$0xff]
    %v81 = vld [vmem:[#allocation5 + $0xc0] sm:$0xff]
    %v82 = vld [vmem:[#allocation5 + $0xc8] sm:$0xff]
    %v83 = vld [vmem:[#allocation5 + $0xd0] sm:$0xff]
    %v84 = vld [vmem:[#allocation5 + $0xd8] sm:$0xff]
    %v85 = vld [vmem:[#allocation5 + $0xe0] sm:$0xff]
    %v86 = vld [vmem:[#allocation5 + $0xe8] sm:$0xff]
    %v87 = vld [vmem:[#allocation5 + $0xf0] sm:$0xff]
    %v88 = vld [vmem:[#allocation5 + $0xf8] sm:$0xff]
    %v105 = vunpack.c.l.b16 %v41
    %v106 = vunpack.c.l.b16 %v42
    %v107 = vunpack.c.l.b16 %v43
    %v108 = vunpack.c.l.b16 %v44
    %v109 = vunpack.c.l.b16 %v45
    %v110 = vunpack.c.l.b16 %v46
    %v111 = vunpack.c.l.b16 %v47
    %v112 = vunpack.c.l.b16 %v48
    %v113 = vunpack.c.l.b16 %v49
    %v114 = vunpack.c.l.b16 %v50
    %v115 = vunpack.c.l.b16 %v51
    %v116 = vunpack.c.l.b16 %v52
    %v117 = vunpack.c.l.b16 %v53
    %v118 = vunpack.c.l.b16 %v54
    %v119 = vunpack.c.l.b16 %v55
    %v120 = vunpack.c.l.b16 %v56
    %v121 = vpack.c.b16 %v106, %v105
    %v122 = vpack.c.b16 %v108, %v107
    %v123 = vpack.c.b16 %v110, %v109
    %v124 = vpack.c.b16 %v112, %v111
    %v125 = vpack.c.b16 %v114, %v113
    %v126 = vpack.c.b16 %v116, %v115
    %v127 = vpack.c.b16 %v118, %v117
    %v128 = vpack.c.b16 %v120, %v119
    %v169 = vunpack.c.l.b16 %v57
    %v170 = vunpack.c.h.b16 %v57
    %v171 = vunpack.c.l.b16 %v58
    %v172 = vunpack.c.h.b16 %v58
    %v173 = vunpack.c.l.b16 %v59
    %v174 = vunpack.c.h.b16 %v59
    %v175 = vunpack.c.l.b16 %v60
    %v176 = vunpack.c.h.b16 %v60
    %v177 = vunpack.c.l.b16 %v61
    %v178 = vunpack.c.h.b16 %v61
    %v179 = vunpack.c.l.b16 %v62
    %v180 = vunpack.c.h.b16 %v62
    %v181 = vunpack.c.l.b16 %v63
    %v182 = vunpack.c.h.b16 %v63
    %v183 = vunpack.c.l.b16 %v64
    %v184 = vunpack.c.h.b16 %v64
    %v185 = vunpack.c.l.b16 %v65
    %v186 = vunpack.c.h.b16 %v65
    %v187 = vunpack.c.l.b16 %v66
    %v188 = vunpack.c.h.b16 %v66
    %v189 = vunpack.c.l.b16 %v67
    %v190 = vunpack.c.h.b16 %v67
    %v191 = vunpack.c.l.b16 %v68
    %v192 = vunpack.c.h.b16 %v68
    %v193 = vunpack.c.l.b16 %v69
    %v194 = vunpack.c.h.b16 %v69
    %v195 = vunpack.c.l.b16 %v70
    %v196 = vunpack.c.h.b16 %v70
    %v197 = vunpack.c.l.b16 %v71
    %v198 = vunpack.c.h.b16 %v71
    %v199 = vunpack.c.l.b16 %v72
    %v200 = vunpack.c.h.b16 %v72
    %v201 = vunpack.c.l.b16 %v73
    %v202 = vunpack.c.h.b16 %v73
    %v203 = vunpack.c.l.b16 %v74
    %v204 = vunpack.c.h.b16 %v74
    %v205 = vunpack.c.l.b16 %v75
    %v206 = vunpack.c.h.b16 %v75
    %v207 = vunpack.c.l.b16 %v76
    %v208 = vunpack.c.h.b16 %v76
    %v209 = vunpack.c.l.b16 %v77
    %v210 = vunpack.c.h.b16 %v77
    %v211 = vunpack.c.l.b16 %v78
    %v212 = vunpack.c.h.b16 %v78
    %v213 = vunpack.c.l.b16 %v79
    %v214 = vunpack.c.h.b16 %v79
    %v215 = vunpack.c.l.b16 %v80
    %v216 = vunpack.c.h.b16 %v80
    %v217 = vunpack.c.l.b16 %v81
    %v218 = vunpack.c.h.b16 %v81
    %v219 = vunpack.c.l.b16 %v82
    %v220 = vunpack.c.h.b16 %v82
    %v221 = vunpack.c.l.b16 %v83
    %v222 = vunpack.c.h.b16 %v83
    %v223 = vunpack.c.l.b16 %v84
    %v224 = vunpack.c.h.b16 %v84
    %v225 = vunpack.c.l.b16 %v85
    %v226 = vunpack.c.h.b16 %v85
    %v227 = vunpack.c.l.b16 %v86
    %v228 = vunpack.c.h.b16 %v86
    %v229 = vunpack.c.l.b16 %v87
    %v230 = vunpack.c.h.b16 %v87
    %v231 = vunpack.c.l.b16 %v88
    %v232 = vunpack.c.h.b16 %v88
    %v233 = vpack.c.b16 %v173, %v169
    %v234 = vpack.c.b16 %v174, %v170
    %v235 = vpack.c.b16 %v175, %v171
    %v236 = vpack.c.b16 %v176, %v172
    %v237 = vpack.c.b16 %v181, %v177
    %v238 = vpack.c.b16 %v182, %v178
    %v239 = vpack.c.b16 %v183, %v179
    %v240 = vpack.c.b16 %v184, %v180
    %v241 = vpack.c.b16 %v189, %v185
    %v242 = vpack.c.b16 %v190, %v186
    %v243 = vpack.c.b16 %v191, %v187
    %v244 = vpack.c.b16 %v192, %v188
    %v245 = vpack.c.b16 %v197, %v193
    %v246 = vpack.c.b16 %v198, %v194
    %v247 = vpack.c.b16 %v199, %v195
    %v248 = vpack.c.b16 %v200, %v196
    %v249 = vpack.c.b16 %v205, %v201
    %v250 = vpack.c.b16 %v206, %v202
    %v251 = vpack.c.b16 %v207, %v203
    %v252 = vpack.c.b16 %v208, %v204
    %v253 = vpack.c.b16 %v213, %v209
    %v254 = vpack.c.b16 %v214, %v210
    %v255 = vpack.c.b16 %v215, %v211
    %v256 = vpack.c.b16 %v216, %v212
    %v257 = vpack.c.b16 %v221, %v217
    %v258 = vpack.c.b16 %v222, %v218
    %v259 = vpack.c.b16 %v223, %v219
    %v260 = vpack.c.b16 %v224, %v220
    %v261 = vpack.c.b16 %v229, %v225
    %v262 = vpack.c.b16 %v230, %v226
    %v263 = vpack.c.b16 %v231, %v227
    %v264 = vpack.c.b16 %v232, %v228
    %297 = vmatprep.subr.bf16.mxu0 %v234
    %298 = vmatpush1.bf16.msra.mxu0 %v233
    %299 = vmatprep.subr.bf16.mxu0 %v238
    %300 = vmatpush1.bf16.msra.mxu0 %v237
    %301 = vmatprep.subr.bf16.mxu0 %v242
    %302 = vmatpush1.bf16.msra.mxu0 %v241
    %303 = vmatprep.subr.bf16.mxu0 %v246
    %304 = vmatpush1.bf16.msra.mxu0 %v245
    %305 = vmatprep.subr.bf16.mxu0 %v250
    %306 = vmatpush1.bf16.msra.mxu0 %v249
    %307 = vmatprep.subr.bf16.mxu0 %v254
    %308 = vmatpush1.bf16.msra.mxu0 %v253
    %309 = vmatprep.subr.bf16.mxu0 %v258
    %310 = vmatpush1.bf16.msra.mxu0 %v257
    %311 = vmatprep.subr.bf16.mxu0 %v262
    %312 = vmatpush1.bf16.msra.mxu0 %v261
    %313 = vmatprep.subr.bf16.mxu0 0
    %314 = vmatpush1.bf16.msra.mxu0 0
    %315 = vmatprep.subr.bf16.mxu0 0
    %316 = vmatpush1.bf16.msra.mxu0 0
    %317 = vmatprep.subr.bf16.mxu0 0
    %318 = vmatpush1.bf16.msra.mxu0 0
    %319 = vmatprep.subr.bf16.mxu0 0
    %320 = vmatpush1.bf16.msra.mxu0 0
    %321 = vmatprep.subr.bf16.mxu0 0
    %322 = vmatpush1.bf16.msra.mxu0 0
    %323 = vmatprep.subr.bf16.mxu0 0
    %324 = vmatpush1.bf16.msra.mxu0 0
    %325 = vmatprep.subr.bf16.mxu0 0
    %326 = vmatpush1.bf16.msra.mxu0 0
    %327 = vmatprep.subr.bf16.mxu0 0
    %328 = vmatpush1.bf16.msra.mxu0 0
    %329 = vmatprep.mubr.bf16.mxu0 0
    %330 = vmatmul.mubr.bf16.gmra.mrb[0].mxu0 %v121
    %v331 = vpop.f32.mrb[0].mxu0
    %v332 = vadd.f32 0.0, %v331
    %v333 = vpop.f32.mrb[0].mxu0
    %v334 = vadd.f32 0.0, %v333
    %v335 = vpop.f32.mrb[0].mxu0
    %v336 = vadd.f32 0.0, %v335
    %v337 = vpop.f32.mrb[0].mxu0
    %v338 = vadd.f32 0.0, %v337
    %339 = vmatprep.mubr.bf16.mxu0 0
    %340 = vmatmul.mubr.bf16.gmra.mrb[0].mxu0 %v122
    %v341 = vpop.f32.mrb[0].mxu0
    %v342 = vadd.f32 0.0, %v341
    %v343 = vpop.f32.mrb[0].mxu0
    %v344 = vadd.f32 0.0, %v343
    %v345 = vpop.f32.mrb[0].mxu0
    %v346 = vadd.f32 0.0, %v345
    %v347 = vpop.f32.mrb[0].mxu0
    %v348 = vadd.f32 0.0, %v347
    %349 = vmatprep.mubr.bf16.mxu0 0
    %350 = vmatmul.mubr.bf16.gmra.mrb[0].mxu0 %v123
    %v351 = vpop.f32.mrb[0].mxu0
    %v352 = vadd.f32 0.0, %v351
    %v353 = vpop.f32.mrb[0].mxu0
    %v354 = vadd.f32 0.0, %v353
    %v355 = vpop.f32.mrb[0].mxu0
    %v356 = vadd.f32 0.0, %v355
    %v357 = vpop.f32.mrb[0].mxu0
    %v358 = vadd.f32 0.0, %v357
    %359 = vmatprep.mubr.bf16.mxu0 0
    %360 = vmatmul.mubr.bf16.gmra.mrb[0].mxu0 %v124
    %v361 = vpop.f32.mrb[0].mxu0
    %v362 = vadd.f32 0.0, %v361
    %v363 = vpop.f32.mrb[0].mxu0
    %v364 = vadd.f32 0.0, %v363
    %v365 = vpop.f32.mrb[0].mxu0
    %v366 = vadd.f32 0.0, %v365
    %v367 = vpop.f32.mrb[0].mxu0
    %v368 = vadd.f32 0.0, %v367
    %369 = vmatprep.mubr.bf16.mxu0 0
    %370 = vmatmul.mubr.bf16.gmra.mrb[0].mxu0 %v125
    %v371 = vpop.f32.mrb[0].mxu0
    %v372 = vadd.f32 0.0, %v371
    %v373 = vpop.f32.mrb[0].mxu0
    %v374 = vadd.f32 0.0, %v373
    %v375 = vpop.f32.mrb[0].mxu0
    %v376 = vadd.f32 0.0, %v375
    %v377 = vpop.f32.mrb[0].mxu0
    %v378 = vadd.f32 0.0, %v377
    %379 = vmatprep.mubr.bf16.mxu0 0
    %380 = vmatmul.mubr.bf16.gmra.mrb[0].mxu0 %v126
    %v381 = vpop.f32.mrb[0].mxu0
    %v382 = vadd.f32 0.0, %v381
    %v383 = vpop.f32.mrb[0].mxu0
    %v384 = vadd.f32 0.0, %v383
    %v385 = vpop.f32.mrb[0].mxu0
    %v386 = vadd.f32 0.0, %v385
    %v387 = vpop.f32.mrb[0].mxu0
    %v388 = vadd.f32 0.0, %v387
    %389 = vmatprep.mubr.bf16.mxu0 0
    %390 = vmatmul.mubr.bf16.gmra.mrb[0].mxu0 %v127
    %v391 = vpop.f32.mrb[0].mxu0
    %v392 = vadd.f32 0.0, %v391
    %v393 = vpop.f32.mrb[0].mxu0
    %v394 = vadd.f32 0.0, %v393
    %v395 = vpop.f32.mrb[0].mxu0
    %v396 = vadd.f32 0.0, %v395
    %v397 = vpop.f32.mrb[0].mxu0
    %v398 = vadd.f32 0.0, %v397
    %399 = vmatprep.mubr.bf16.mxu0 0
    %400 = vmatmul.mubr.bf16.gmra.mrb[0].mxu0 %v128
    %v401 = vpop.f32.mrb[0].mxu0
    %v402 = vadd.f32 0.0, %v401
    %v403 = vpop.f32.mrb[0].mxu0
    %v404 = vadd.f32 0.0, %v403
    %v405 = vpop.f32.mrb[0].mxu0
    %v406 = vadd.f32 0.0, %v405
    %v407 = vpop.f32.mrb[0].mxu0
    %v408 = vadd.f32 0.0, %v407
    %409 = vdwg.mxu0
    %410 = vmatprep.subr.bf16.mxu0 %v236
    %411 = vmatpush1.bf16.msra.mxu0 %v235
    %412 = vmatprep.subr.bf16.mxu0 %v240
    %413 = vmatpush1.bf16.msra.mxu0 %v239
    %414 = vmatprep.subr.bf16.mxu0 %v244
    %415 = vmatpush1.bf16.msra.mxu0 %v243
    %416 = vmatprep.subr.bf16.mxu0 %v248
    %417 = vmatpush1.bf16.msra.mxu0 %v247
    %418 = vmatprep.subr.bf16.mxu0 %v252
    %419 = vmatpush1.bf16.msra.mxu0 %v251
    %420 = vmatprep.subr.bf16.mxu0 %v256
    %421 = vmatpush1.bf16.msra.mxu0 %v255
    %422 = vmatprep.subr.bf16.mxu0 %v260
    %423 = vmatpush1.bf16.msra.mxu0 %v259
    %424 = vmatprep.subr.bf16.mxu0 %v264
    %425 = vmatpush1.bf16.msra.mxu0 %v263
    %426 = vmatprep.subr.bf16.mxu0 0
    %427 = vmatpush1.bf16.msra.mxu0 0
    %428 = vmatprep.subr.bf16.mxu0 0
    %429 = vmatpush1.bf16.msra.mxu0 0
    %430 = vmatprep.subr.bf16.mxu0 0
    %431 = vmatpush1.bf16.msra.mxu0 0
    %432 = vmatprep.subr.bf16.mxu0 0
    %433 = vmatpush1.bf16.msra.mxu0 0
    %434 = vmatprep.subr.bf16.mxu0 0
    %435 = vmatpush1.bf16.msra.mxu0 0
    %436 = vmatprep.subr.bf16.mxu0 0
    %437 = vmatpush1.bf16.msra.mxu0 0
    %438 = vmatprep.subr.bf16.mxu0 0
    %439 = vmatpush1.bf16.msra.mxu0 0
    %440 = vmatprep.subr.bf16.mxu0 0
    %441 = vmatpush1.bf16.msra.mxu0 0
    %442 = vmatprep.mubr.bf16.mxu0 0
    %443 = vmatmul.mubr.bf16.gmra.mrb[0].mxu0 %v121
    %v444 = vpop.f32.mrb[0].mxu0
    %v445 = vadd.f32 0.0, %v444
    %v446 = vpop.f32.mrb[0].mxu0
    %v447 = vadd.f32 0.0, %v446
    %v448 = vpop.f32.mrb[0].mxu0
    %v449 = vadd.f32 0.0, %v448
    %v450 = vpop.f32.mrb[0].mxu0
    %v451 = vadd.f32 0.0, %v450
    %452 = vmatprep.mubr.bf16.mxu0 0
    %453 = vmatmul.mubr.bf16.gmra.mrb[0].mxu0 %v122
    %v454 = vpop.f32.mrb[0].mxu0
    %v455 = vadd.f32 0.0, %v454
    %v456 = vpop.f32.mrb[0].mxu0
    %v457 = vadd.f32 0.0, %v456
    %v458 = vpop.f32.mrb[0].mxu0
    %v459 = vadd.f32 0.0, %v458
    %v460 = vpop.f32.mrb[0].mxu0
    %v461 = vadd.f32 0.0, %v460
    %462 = vmatprep.mubr.bf16.mxu0 0
    %463 = vmatmul.mubr.bf16.gmra.mrb[0].mxu0 %v123
    %v464 = vpop.f32.mrb[0].mxu0
    %v465 = vadd.f32 0.0, %v464
    %v466 = vpop.f32.mrb[0].mxu0
    %v467 = vadd.f32 0.0, %v466
    %v468 = vpop.f32.mrb[0].mxu0
    %v469 = vadd.f32 0.0, %v468
    %v470 = vpop.f32.mrb[0].mxu0
    %v471 = vadd.f32 0.0, %v470
    %472 = vmatprep.mubr.bf16.mxu0 0
    %473 = vmatmul.mubr.bf16.gmra.mrb[0].mxu0 %v124
    %v474 = vpop.f32.mrb[0].mxu0
    %v475 = vadd.f32 0.0, %v474
    %v476 = vpop.f32.mrb[0].mxu0
    %v477 = vadd.f32 0.0, %v476
    %v478 = vpop.f32.mrb[0].mxu0
    %v479 = vadd.f32 0.0, %v478
    %v480 = vpop.f32.mrb[0].mxu0
    %v481 = vadd.f32 0.0, %v480
    %482 = vmatprep.mubr.bf16.mxu0 0
    %483 = vmatmul.mubr.bf16.gmra.mrb[0].mxu0 %v125
    %v484 = vpop.f32.mrb[0].mxu0
    %v485 = vadd.f32 0.0, %v484
    %v486 = vpop.f32.mrb[0].mxu0
    %v487 = vadd.f32 0.0, %v486
    %v488 = vpop.f32.mrb[0].mxu0
    %v489 = vadd.f32 0.0, %v488
    %v490 = vpop.f32.mrb[0].mxu0
    %v491 = vadd.f32 0.0, %v490
    %492 = vmatprep.mubr.bf16.mxu0 0
    %493 = vmatmul.mubr.bf16.gmra.mrb[0].mxu0 %v126
    %v494 = vpop.f32.mrb[0].mxu0
    %v495 = vadd.f32 0.0, %v494
    %v496 = vpop.f32.mrb[0].mxu0
    %v497 = vadd.f32 0.0, %v496
    %v498 = vpop.f32.mrb[0].mxu0
    %v499 = vadd.f32 0.0, %v498
    %v500 = vpop.f32.mrb[0].mxu0
    %v501 = vadd.f32 0.0, %v500
    %502 = vmatprep.mubr.bf16.mxu0 0
    %503 = vmatmul.mubr.bf16.gmra.mrb[0].mxu0 %v127
    %v504 = vpop.f32.mrb[0].mxu0
    %v505 = vadd.f32 0.0, %v504
    %v506 = vpop.f32.mrb[0].mxu0
    %v507 = vadd.f32 0.0, %v506
    %v508 = vpop.f32.mrb[0].mxu0
    %v509 = vadd.f32 0.0, %v508
    %v510 = vpop.f32.mrb[0].mxu0
    %v511 = vadd.f32 0.0, %v510
    %512 = vmatprep.mubr.bf16.mxu0 0
    %513 = vmatmul.mubr.bf16.gmra.mrb[0].mxu0 %v128
    %v514 = vpop.f32.mrb[0].mxu0
    %v515 = vadd.f32 0.0, %v514
    %v516 = vpop.f32.mrb[0].mxu0
    %v517 = vadd.f32 0.0, %v516
    %v518 = vpop.f32.mrb[0].mxu0
    %v519 = vadd.f32 0.0, %v518
    %v520 = vpop.f32.mrb[0].mxu0
    %v521 = vadd.f32 0.0, %v520
    %522 = vdwg.mxu0
    %v523 = vpack.c.bf16 %v336, %v332
    %v524 = vpack.c.bf16 %v338, %v334
    %v525 = vpack.c.bf16 %v449, %v445
    %v526 = vpack.c.bf16 %v451, %v447
    %v527 = vpack.c.bf16 %v346, %v342
    %v528 = vpack.c.bf16 %v348, %v344
    %v529 = vpack.c.bf16 %v459, %v455
    %v530 = vpack.c.bf16 %v461, %v457
    %v531 = vpack.c.bf16 %v356, %v352
    %v532 = vpack.c.bf16 %v358, %v354
    %v533 = vpack.c.bf16 %v469, %v465
    %v534 = vpack.c.bf16 %v471, %v467
    %v535 = vpack.c.bf16 %v366, %v362
    %v536 = vpack.c.bf16 %v368, %v364
    %v537 = vpack.c.bf16 %v479, %v475
    %v538 = vpack.c.bf16 %v481, %v477
    %v539 = vpack.c.bf16 %v376, %v372
    %v540 = vpack.c.bf16 %v378, %v374
    %v541 = vpack.c.bf16 %v489, %v485
    %v542 = vpack.c.bf16 %v491, %v487
    %v543 = vpack.c.bf16 %v386, %v382
    %v544 = vpack.c.bf16 %v388, %v384
    %v545 = vpack.c.bf16 %v499, %v495
    %v546 = vpack.c.bf16 %v501, %v497
    %v547 = vpack.c.bf16 %v396, %v392
    %v548 = vpack.c.bf16 %v398, %v394
    %v549 = vpack.c.bf16 %v509, %v505
    %v550 = vpack.c.bf16 %v511, %v507
    %v551 = vpack.c.bf16 %v406, %v402
    %v552 = vpack.c.bf16 %v408, %v404
    %v553 = vpack.c.bf16 %v519, %v515
    %v554 = vpack.c.bf16 %v521, %v517
    %v587 = vunpack.c.l.b16 %v523
    %v588 = vunpack.c.l.b16 %v524
    %v589 = vunpack.c.l.b16 %v525
    %v590 = vunpack.c.l.b16 %v526
    %v591 = vunpack.c.h.b16 %v523
    %v592 = vunpack.c.h.b16 %v524
    %v593 = vunpack.c.h.b16 %v525
    %v594 = vunpack.c.h.b16 %v526
    %v595 = vunpack.c.l.b16 %v527
    %v596 = vunpack.c.l.b16 %v528
    %v597 = vunpack.c.l.b16 %v529
    %v598 = vunpack.c.l.b16 %v530
    %v599 = vunpack.c.h.b16 %v527
    %v600 = vunpack.c.h.b16 %v528
    %v601 = vunpack.c.h.b16 %v529
    %v602 = vunpack.c.h.b16 %v530
    %v603 = vunpack.c.l.b16 %v531
    %v604 = vunpack.c.l.b16 %v532
    %v605 = vunpack.c.l.b16 %v533
    %v606 = vunpack.c.l.b16 %v534
    %v607 = vunpack.c.h.b16 %v531
    %v608 = vunpack.c.h.b16 %v532
    %v609 = vunpack.c.h.b16 %v533
    %v610 = vunpack.c.h.b16 %v534
    %v611 = vunpack.c.l.b16 %v535
    %v612 = vunpack.c.l.b16 %v536
    %v613 = vunpack.c.l.b16 %v537
    %v614 = vunpack.c.l.b16 %v538
    %v615 = vunpack.c.h.b16 %v535
    %v616 = vunpack.c.h.b16 %v536
    %v617 = vunpack.c.h.b16 %v537
    %v618 = vunpack.c.h.b16 %v538
    %v619 = vunpack.c.l.b16 %v539
    %v620 = vunpack.c.l.b16 %v540
    %v621 = vunpack.c.l.b16 %v541
    %v622 = vunpack.c.l.b16 %v542
    %v623 = vunpack.c.h.b16 %v539
    %v624 = vunpack.c.h.b16 %v540
    %v625 = vunpack.c.h.b16 %v541
    %v626 = vunpack.c.h.b16 %v542
    %v627 = vunpack.c.l.b16 %v543
    %v628 = vunpack.c.l.b16 %v544
    %v629 = vunpack.c.l.b16 %v545
    %v630 = vunpack.c.l.b16 %v546
    %v631 = vunpack.c.h.b16 %v543
    %v632 = vunpack.c.h.b16 %v544
    %v633 = vunpack.c.h.b16 %v545
    %v634 = vunpack.c.h.b16 %v546
    %v635 = vunpack.c.l.b16 %v547
    %v636 = vunpack.c.l.b16 %v548
    %v637 = vunpack.c.l.b16 %v549
    %v638 = vunpack.c.l.b16 %v550
    %v639 = vunpack.c.h.b16 %v547
    %v640 = vunpack.c.h.b16 %v548
    %v641 = vunpack.c.h.b16 %v549
    %v642 = vunpack.c.h.b16 %v550
    %v643 = vunpack.c.l.b16 %v551
    %v644 = vunpack.c.l.b16 %v552
    %v645 = vunpack.c.l.b16 %v553
    %v646 = vunpack.c.l.b16 %v554
    %v647 = vunpack.c.h.b16 %v551
    %v648 = vunpack.c.h.b16 %v552
    %v649 = vunpack.c.h.b16 %v553
    %v650 = vunpack.c.h.b16 %v554
    %v651 = vpack.c.b16 %v588, %v587
    %v652 = vpack.c.b16 %v590, %v589
    %v653 = vpack.c.b16 %v592, %v591
    %v654 = vpack.c.b16 %v594, %v593
    %v655 = vpack.c.b16 %v596, %v595
    %v656 = vpack.c.b16 %v598, %v597
    %v657 = vpack.c.b16 %v600, %v599
    %v658 = vpack.c.b16 %v602, %v601
    %v659 = vpack.c.b16 %v604, %v603
    %v660 = vpack.c.b16 %v606, %v605
    %v661 = vpack.c.b16 %v608, %v607
    %v662 = vpack.c.b16 %v610, %v609
    %v663 = vpack.c.b16 %v612, %v611
    %v664 = vpack.c.b16 %v614, %v613
    %v665 = vpack.c.b16 %v616, %v615
    %v666 = vpack.c.b16 %v618, %v617
    %v667 = vpack.c.b16 %v620, %v619
    %v668 = vpack.c.b16 %v622, %v621
    %v669 = vpack.c.b16 %v624, %v623
    %v670 = vpack.c.b16 %v626, %v625
    %v671 = vpack.c.b16 %v628, %v627
    %v672 = vpack.c.b16 %v630, %v629
    %v673 = vpack.c.b16 %v632, %v631
    %v674 = vpack.c.b16 %v634, %v633
    %v675 = vpack.c.b16 %v636, %v635
    %v676 = vpack.c.b16 %v638, %v637
    %v677 = vpack.c.b16 %v640, %v639
    %v678 = vpack.c.b16 %v642, %v641
    %v679 = vpack.c.b16 %v644, %v643
    %v680 = vpack.c.b16 %v646, %v645
    %v681 = vpack.c.b16 %v648, %v647
    %v682 = vpack.c.b16 %v650, %v649
    %715 = vst [vmem:[#allocation7] sm:$0xff] %v651
    %716 = vst [vmem:[#allocation7 + $0x8] sm:$0xff] %v652
    %717 = vst [vmem:[#allocation7 + $0x10] sm:$0xff] %v653
    %718 = vst [vmem:[#allocation7 + $0x18] sm:$0xff] %v654
    %719 = vst [vmem:[#allocation7 + $0x20] sm:$0xff] %v655
    %720 = vst [vmem:[#allocation7 + $0x28] sm:$0xff] %v656
    %721 = vst [vmem:[#allocation7 + $0x30] sm:$0xff] %v657
    %722 = vst [vmem:[#allocation7 + $0x38] sm:$0xff] %v658
    %723 = vst [vmem:[#allocation7 + $0x40] sm:$0xff] %v659
    %724 = vst [vmem:[#allocation7 + $0x48] sm:$0xff] %v660
    %725 = vst [vmem:[#allocation7 + $0x50] sm:$0xff] %v661
    %726 = vst [vmem:[#allocation7 + $0x58] sm:$0xff] %v662
    %727 = vst [vmem:[#allocation7 + $0x60] sm:$0xff] %v663
    %728 = vst [vmem:[#allocation7 + $0x68] sm:$0xff] %v664
    %729 = vst [vmem:[#allocation7 + $0x70] sm:$0xff] %v665
    %730 = vst [vmem:[#allocation7 + $0x78] sm:$0xff] %v666
    %731 = vst [vmem:[#allocation7 + $0x80] sm:$0xff] %v667
    %732 = vst [vmem:[#allocation7 + $0x88] sm:$0xff] %v668
    %733 = vst [vmem:[#allocation7 + $0x90] sm:$0xff] %v669
    %734 = vst [vmem:[#allocation7 + $0x98] sm:$0xff] %v670
    %735 = vst [vmem:[#allocation7 + $0xa0] sm:$0xff] %v671
    %736 = vst [vmem:[#allocation7 + $0xa8] sm:$0xff] %v672
    %737 = vst [vmem:[#allocation7 + $0xb0] sm:$0xff] %v673
    %738 = vst [vmem:[#allocation7 + $0xb8] sm:$0xff] %v674
    %739 = vst [vmem:[#allocation7 + $0xc0] sm:$0xff] %v675
    %740 = vst [vmem:[#allocation7 + $0xc8] sm:$0xff] %v676
    %741 = vst [vmem:[#allocation7 + $0xd0] sm:$0xff] %v677
    %742 = vst [vmem:[#allocation7 + $0xd8] sm:$0xff] %v678
    %743 = vst [vmem:[#allocation7 + $0xe0] sm:$0xff] %v679
    %744 = vst [vmem:[#allocation7 + $0xe8] sm:$0xff] %v680
    %745 = vst [vmem:[#allocation7 + $0xf0] sm:$0xff] %v681
    %746 = vst [vmem:[#allocation7 + $0xf8] sm:$0xff] %v682
    // Predicated region
    $region18: #{tpu_custom_call.1} parent=1 // pred_check
      _
    $region19: #{tpu_custom_call.1} parent=1 // pred_check_branch
      %748 = sbr.rel (0) target = $region21
    $region20: #{tpu_custom_call.1} parent=1 // pred_region
      %s750 = ssub.s32 4096, 4096
      %751 = vsyncadd [#allocation4], %s750
      %s752 = sshll.u32 [#allocation7], 4
      %s753 = int_to_ptr.vmem [resolvable:$true] %s752
      %758 = dma.vmem_to_hbm [thread:$0]  %s753, 4096, %s2, [#allocation4], 256, 256, 16
    $region21: #{tpu_custom_call.1} parent=1 // pred_fallthru
      _
    // Predicated region
    $region22: #{tpu_custom_call.1} parent=1 // pred_check
      _
    $region23: #{tpu_custom_call.1} parent=1 // pred_check_branch
      %760 = sbr.rel (0) target = $region25
    $region24: #{tpu_custom_call.1} parent=1 // pred_region
      %761 = dma.done [#allocation4], 4096
    $region25: #{tpu_custom_call.1} parent=1 // pred_fallthru
      _
    %762 = vsyncpa [#allocation3], 1
    %763 = vsyncpa [#allocation6], 1
    %764 = vsyncpa [#allocation4], 1

</llo_original>
